<compile_context>
chip_gen: v7x
topology: tpu7x:2x2x1
jax: 0.10.0
libtpu: 0.0.40
codegen_flags: <defaults>
</compile_context>

<pallas_src>
import jax
import jax.numpy as jnp
from jax.experimental import pallas as pl
from jax.experimental.pallas import tpu as pltpu


def _round_up(n, m):
    return ((n + m - 1) // m) * m


def _cdiv(a, b):
    return (a + b - 1) // b


def _num_tensorcores():
    """Best-effort TensorCore count per chip (v7x has 2, v5e/v6e have 1)."""
    try:
        kind = jax.devices()[0].device_kind.lower()
        if "v7" in kind:
            return 2
    except Exception:
        pass
    return 1


def _make_critic_kernel(n_feat, chunk):
    """Builds the per-tile kernel. All shapes/offsets below are static."""

    def kernel(x_ref, w1_ref, b1_ref, w2_ref, b2_ref, o_ref):
        # x: [F, TB]   w1: [H, F]   b1: [H, 1]   w2: [H, 1]
        # b2: [1] (SMEM scalar)     o: [1, TB]
        tb = x_ref.shape[1]

        # Hoisted once per grid step (not per chunk).
        w1 = w1_ref[...]                                   # [H, F]
        b1 = b1_ref[...]                                   # [H, 1]
        w2 = w2_ref[...]                                   # [H, 1]
        b2 = b2_ref[0]                                     # scalar
        w1_cols = [w1[:, f:f + 1] for f in range(n_feat)]  # static slices

        def do_chunk(off, width):
            xc = x_ref[:, off:off + width]                 # [F, width]
            # Layer 1: h = W1 @ x + b1 as F broadcast-FMAs on the VPU
            # (K = F = 3 is far too small to be worth the MXU).
            h = w1_cols[0] * xc[0:1, :]                    # [H, width]
            for f in range(1, n_feat):
                h = h + w1_cols[f] * xc[f:f + 1, :]
            h = jnp.maximum(h + b1, 0.0)                   # ReLU
            # Layer 2 (N = 1): broadcast-mul + sublane reduce (VPU + XLU).
            v = jnp.sum(w2 * h, axis=0, keepdims=True) + b2
            o_ref[:, off:off + width] = v.astype(o_ref.dtype)

        # Unrolled static chunk loop: bounds the live vreg footprint of the
        # [H, chunk] hidden tile regardless of how big the DMA tile is.
        ch = min(chunk, tb)
        n_full, rem = divmod(tb, ch)
        for c in range(n_full):
            do_chunk(c * ch, ch)
        if rem:  # rem is a multiple of 128 by construction
            do_chunk(n_full * ch, rem)

    return kernel


def critic_forward(x, w1, b1, w2, b2, *, block_b=16384, chunk=512,
                   x_transposed=False):
    """Critic forward pass.

    x:  [B, F] float32 (or [F, B] if x_transposed=True to skip the wrapper
        transpose entirely — preferred when the caller can store it that way)
    w1: [H, F]  (PyTorch fc1.weight layout)
    b1: [H, 1]
    w2: [H, 1]  (fc2.weight transposed)
    b2: [1]
    returns: [B, 1] state values (matches the PyTorch module output).
    """
    if x_transposed:
        F, B = x.shape
        xt_raw = x
    else:
        B, F = x.shape
        xt_raw = x.T
    H = w1.shape[0]

    # --- tiling -----------------------------------------------------------
    # Balanced tile size (caps padding at <=127 lanes per tile); at least
    # `num_cores` grid steps when B is large enough so v7x can use both TCs,
    # otherwise as few steps as possible (grid is a serial loop on v5e/v6e).
    num_cores = _num_tensorcores()
    min_steps = num_cores if B > num_cores * 128 else 1
    n_tiles = max(min_steps, _cdiv(B, block_b))
    tb = _round_up(_cdiv(B, n_tiles), 128)
    grid = _cdiv(B, tb)
    b_pad = grid * tb

    # Single fused transpose+pad (no zeros + dynamic_update_slice).
    xt = jnp.pad(xt_raw, ((0, 0), (0, b_pad - B))) if b_pad != B else xt_raw

    cost = pl.CostEstimate(
        flops=2 * b_pad * (F * H + H),
        transcendentals=0,
        bytes_accessed=4 * (b_pad * F + b_pad + H * F + 2 * H + 1),
    )

    out = pl.pallas_call(
        _make_critic_kernel(F, chunk),
        out_shape=jax.ShapeDtypeStruct((1, b_pad), jnp.float32),
        grid=(grid,),
        in_specs=[
            pl.BlockSpec((F, tb), lambda i: (0, i)),   # x tile (pipelined)
            pl.BlockSpec((H, F), lambda i: (0, 0)),    # w1 (resident)
            pl.BlockSpec((H, 1), lambda i: (0, 0)),    # b1 (resident)
            pl.BlockSpec((H, 1), lambda i: (0, 0)),    # w2 (resident)
            pl.BlockSpec(memory_space=pltpu.SMEM),     # b2 scalar
        ],
        out_specs=pl.BlockSpec((1, tb), lambda i: (0, i)),
        compiler_params=pltpu.CompilerParams(
            dimension_semantics=("parallel",),
        ),
        cost_estimate=cost,
    )(xt, w1, b1, w2, b2)

    # Padded lanes hold junk values; this slice discards them (do not remove).
    return out[0, :B].reshape(B, 1)


def init_params(key, n_features, hidden=30):
    """Parameter init mirroring the PyTorch module.

    Weights ~ N(0, 0.1) (the reference .normal_(0.0, 0.1)); biases use
    PyTorch's default Linear init U(-1/sqrt(fan_in), 1/sqrt(fan_in)).
    Returned in kernel layout: w1 [H, F], b1 [H, 1], w2 [H, 1], b2 [1].
    """
    k1, k2, k3, k4 = jax.random.split(key, 4)
    w1 = 0.1 * jax.random.normal(k1, (hidden, n_features), dtype=jnp.float32)
    b1 = jax.random.uniform(
        k2, (hidden, 1), dtype=jnp.float32,
        minval=-1.0 / jnp.sqrt(n_features), maxval=1.0 / jnp.sqrt(n_features))
    w2 = 0.1 * jax.random.normal(k3, (hidden, 1), dtype=jnp.float32)
    b2 = jax.random.uniform(
        k4, (1,), dtype=jnp.float32,
        minval=-1.0 / jnp.sqrt(hidden), maxval=1.0 / jnp.sqrt(hidden))
    return w1, b1, w2, b2


def _reference(x, w1, b1, w2, b2):
    return jnp.maximum(x @ w1.T + b1.T, 0.0) @ w2 + b2


if __name__ == "__main__":
    # Pendulum-v1 observation space has 3 features.
    n_features = 3

    key = jax.random.PRNGKey(0)
    k_x1, k_x2, k_p = jax.random.split(key, 3)
    w1, b1, w2, b2 = init_params(k_p, n_features)

    # Small batch of 2 states (matches the RL use case).
    x_small = jax.random.normal(k_x1, (2, n_features), dtype=jnp.float32)
    v_small = jax.block_until_ready(critic_forward(x_small, w1, b1, w2, b2))
    ref_small = _reference(x_small, w1, b1, w2, b2)
    assert v_small.shape == (2, 1)
    assert jnp.allclose(v_small, ref_small, rtol=1e-5, atol=1e-5)

    # Larger batch to exercise the multi-chunk path (incl. remainder chunk).
    x_big = jax.random.normal(k_x2, (700, n_features), dtype=jnp.float32)
    v_big = jax.block_until_ready(critic_forward(x_big, w1, b1, w2, b2))
    ref_big = _reference(x_big, w1, b1, w2, b2)
    assert v_big.shape == (700, 1)
    assert jnp.allclose(v_big, ref_big, rtol=1e-5, atol=1e-5)

    print("KERNEL_OK")
</pallas_src>

<mosaic_0001>
module attributes {stable_mosaic.version = 11 : i64} {
  func.func @kernel(%arg0: i32, %arg1: memref<3x128xf32, #tpu.memory_space<vmem>>, %arg2: memref<30x3xf32, #tpu.memory_space<vmem>>, %arg3: memref<30x1xf32, #tpu.memory_space<vmem>>, %arg4: memref<30x1xf32, #tpu.memory_space<vmem>>, %arg5: memref<1xf32, #tpu.memory_space<smem>>, %arg6: memref<1x128xf32, #tpu.memory_space<vmem>>) attributes {dimension_semantics = [#tpu.dimension_semantics<parallel>], iteration_bounds = array<i64: 1>, scalar_prefetch = 0 : i64, scratch_operands = 0 : i64, tpu.core_type = #tpu.core_type<tc>, window_params = [{transform_indices = @transform_0, window_bounds = array<i64: 3, 128>}, {pipeline_mode = #tpu.pipeline_mode<synchronous>, transform_indices = @transform_1, window_bounds = array<i64: 30, 3>}, {pipeline_mode = #tpu.pipeline_mode<synchronous>, transform_indices = @transform_2, window_bounds = array<i64: 30, 1>}, {pipeline_mode = #tpu.pipeline_mode<synchronous>, transform_indices = @transform_3, window_bounds = array<i64: 30, 1>}, {transform_indices = @transform_4, window_bounds = array<i64: 1>}, {transform_indices = @transform_5, window_bounds = array<i64: 1, 128>}]} {
    %c0 = arith.constant 0 : index
    %c0_0 = arith.constant 0 : index
    %0 = vector.load %arg2[%c0, %c0_0] : memref<30x3xf32, #tpu.memory_space<vmem>>, vector<30x3xf32>
    %c0_1 = arith.constant 0 : index
    %c0_2 = arith.constant 0 : index
    %1 = vector.load %arg3[%c0_1, %c0_2] : memref<30x1xf32, #tpu.memory_space<vmem>>, vector<30x1xf32>
    %c0_3 = arith.constant 0 : index
    %c0_4 = arith.constant 0 : index
    %2 = vector.load %arg4[%c0_3, %c0_4] : memref<30x1xf32, #tpu.memory_space<vmem>>, vector<30x1xf32>
    %c0_5 = arith.constant 0 : index
    %3 = memref.load %arg5[%c0_5] : memref<1xf32, #tpu.memory_space<smem>>
    %4 = vector.extract_strided_slice %0 {offsets = [0, 0], sizes = [30, 1], strides = [1, 1]} : vector<30x3xf32> to vector<30x1xf32>
    %5 = vector.extract_strided_slice %0 {offsets = [0, 1], sizes = [30, 1], strides = [1, 1]} : vector<30x3xf32> to vector<30x1xf32>
    %6 = vector.extract_strided_slice %0 {offsets = [0, 2], sizes = [30, 1], strides = [1, 1]} : vector<30x3xf32> to vector<30x1xf32>
    %c0_6 = arith.constant 0 : index
    %c0_7 = arith.constant 0 : index
    %7 = vector.load %arg1[%c0_6, %c0_7] : memref<3x128xf32, #tpu.memory_space<vmem>>, vector<3x128xf32>
    %8 = vector.extract_strided_slice %7 {offsets = [0, 0], sizes = [1, 128], strides = [1, 1]} : vector<3x128xf32> to vector<1x128xf32>
    %9 = vector.broadcast %4 : vector<30x1xf32> to vector<30x128xf32>
    %10 = vector.broadcast %8 : vector<1x128xf32> to vector<30x128xf32>
    %11 = arith.mulf %9, %10 : vector<30x128xf32>
    %12 = vector.extract_strided_slice %7 {offsets = [1, 0], sizes = [1, 128], strides = [1, 1]} : vector<3x128xf32> to vector<1x128xf32>
    %13 = vector.broadcast %5 : vector<30x1xf32> to vector<30x128xf32>
    %14 = vector.broadcast %12 : vector<1x128xf32> to vector<30x128xf32>
    %15 = arith.mulf %13, %14 : vector<30x128xf32>
    %16 = arith.addf %11, %15 : vector<30x128xf32>
    %17 = vector.extract_strided_slice %7 {offsets = [2, 0], sizes = [1, 128], strides = [1, 1]} : vector<3x128xf32> to vector<1x128xf32>
    %18 = vector.broadcast %6 : vector<30x1xf32> to vector<30x128xf32>
    %19 = vector.broadcast %17 : vector<1x128xf32> to vector<30x128xf32>
    %20 = arith.mulf %18, %19 : vector<30x128xf32>
    %21 = arith.addf %16, %20 : vector<30x128xf32>
    %22 = vector.broadcast %1 : vector<30x1xf32> to vector<30x128xf32>
    %23 = arith.addf %21, %22 : vector<30x128xf32>
    %cst = arith.constant 0.000000e+00 : f32
    %24 = vector.broadcast %cst : f32 to vector<30x128xf32>
    %25 = arith.maximumf %23, %24 : vector<30x128xf32>
    %26 = vector.broadcast %2 : vector<30x1xf32> to vector<30x128xf32>
    %27 = arith.mulf %26, %25 : vector<30x128xf32>
    %cst_8 = arith.constant dense<0.000000e+00> : vector<128xf32>
    %28 = vector.multi_reduction <add>, %27, %cst_8 [0] : vector<30x128xf32> to vector<128xf32>
    %29 = vector.shape_cast %28 : vector<128xf32> to vector<1x128xf32>
    %30 = vector.broadcast %3 : f32 to vector<1x128xf32>
    %31 = arith.addf %29, %30 : vector<1x128xf32>
    %c0_9 = arith.constant 0 : index
    %c0_10 = arith.constant 0 : index
    %32 = vector.load %arg6[%c0_9, %c0_10] : memref<1x128xf32, #tpu.memory_space<vmem>>, vector<1x128xf32>
    tpu.vector_store %arg6[%c0_9, %c0_10], %31 {strides = array<i32>} : memref<1x128xf32, #tpu.memory_space<vmem>>, vector<1x128xf32>,
    return
  }
  func.func @transform_0(%arg0: i32) -> (i32, i32) {
    %c0_i32 = arith.constant 0 : i32
    %c0_i32_0 = arith.constant 0 : i32
    return %c0_i32, %arg0 : i32, i32
  }
  func.func @transform_1(%arg0: i32) -> (i32, i32) {
    %c0_i32 = arith.constant 0 : i32
    %c0_i32_0 = arith.constant 0 : i32
    %c0_i32_1 = arith.constant 0 : i32
    return %c0_i32, %c0_i32_0 : i32, i32
  }
  func.func @transform_2(%arg0: i32) -> (i32, i32) {
    %c0_i32 = arith.constant 0 : i32
    %c0_i32_0 = arith.constant 0 : i32
    %c0_i32_1 = arith.constant 0 : i32
    return %c0_i32, %c0_i32_0 : i32, i32
  }
  func.func @transform_3(%arg0: i32) -> (i32, i32) {
    %c0_i32 = arith.constant 0 : i32
    %c0_i32_0 = arith.constant 0 : i32
    %c0_i32_1 = arith.constant 0 : i32
    return %c0_i32, %c0_i32_0 : i32, i32
  }
  func.func @transform_4(%arg0: i32) -> i32 {
    %c0_i32 = arith.constant 0 : i32
    %c0_i32_0 = arith.constant 0 : i32
    return %c0_i32 : i32
  }
  func.func @transform_5(%arg0: i32) -> (i32, i32) {
    %c0_i32 = arith.constant 0 : i32
    %c0_i32_0 = arith.constant 0 : i32
    return %c0_i32, %arg0 : i32, i32
  }
}

</mosaic_0001>

<llo_original>
// kernel: tpu_custom_call.1
$region0: #{tpu_custom_call.1}
  #allocation0 [shape = 'u32[]', space=smem, size = 0x4, offset = 0x4, fixed_abs, tag = 'smem constant byte address 0x4 - core index']
  #allocation1 [shape = 'u32[144,128]{1,0:T(1,128)}', space=vmem, size = 0x12000, scoped, tag = 'internal scratch']
  #allocation2 [shape = 'f32[1]{0:T(128)S(6)}', space=smem, size = 0x200, scoped, tag = 'scoped memory for tpu_custom_call.1']
  %s0 = inlined_call_operand.vmem [shape: f32[3,128], index: 0, kind: input, shape index: {}]
  %s1 = inlined_call_operand.vmem [shape: f32[30,3], index: 1, kind: input, shape index: {}]
  %s2 = inlined_call_operand.vmem [shape: f32[30,1], index: 2, kind: input, shape index: {}]
  %s3 = inlined_call_operand.vmem [shape: f32[30,1], index: 3, kind: input, shape index: {}]
  %s4 = inlined_call_operand.<no memory space> [shape: f32[1], index: 4, kind: input, shape index: {}]
  %s5 = inlined_call_operand.hbm [shape: f32[1,128], index: 5, kind: output, shape index: {}]
  %s6 = sld [smem:[#allocation0]]
  $region30: #{tpu_custom_call.1} parent=0
    _
  %s8 = ssub.s32 1, %s6
  %s9 = scalar_select 0, %s8, %s6
  %10 = sst [smem:[#allocation2]] %s4
  $region1: #{tpu_custom_call.1} parent=0
    #allocation3 [shape = 'u8[512]{0}', space=vmem, size = 0x400, scoped, tag = 'output window, operand 0, single buffered']
    #allocation4 [shape = 's32[1]{0}', space=sflag, size = 0x4, scoped, tag = 'scoped memory for tpu_custom_call.1']
    %11 = vsyncpa [#allocation4], 0
    // Predicated region
    $region2: #{tpu_custom_call.1} parent=1 // pred_check
      _
    $region3: #{tpu_custom_call.1} parent=1 // pred_check_branch
      %13 = sbr.rel (0) target = $region5
    $region4: #{tpu_custom_call.1} parent=1 // pred_region
      _
    $region5: #{tpu_custom_call.1} parent=1 // pred_fallthru
      _
    // Predicated region
    $region6: #{tpu_custom_call.1} parent=1 // pred_check
      _
    $region7: #{tpu_custom_call.1} parent=1 // pred_check_branch
      %15 = sbr.rel (0) target = $region9
    $region8: #{tpu_custom_call.1} parent=1 // pred_region
      _
    $region9: #{tpu_custom_call.1} parent=1 // pred_fallthru
      _
    // Predicated region
    $region10: #{tpu_custom_call.1} parent=1 // pred_check
      _
    $region11: #{tpu_custom_call.1} parent=1 // pred_check_branch
      %17 = sbr.rel (0) target = $region13
    $region12: #{tpu_custom_call.1} parent=1 // pred_region
      _
    $region13: #{tpu_custom_call.1} parent=1 // pred_fallthru
      _
    // Predicated region
    $region14: #{tpu_custom_call.1} parent=1 // pred_check
      _
    $region15: #{tpu_custom_call.1} parent=1 // pred_check_branch
      %19 = sbr.rel (0) target = $region17
    $region16: #{tpu_custom_call.1} parent=1 // pred_region
      _
    $region17: #{tpu_custom_call.1} parent=1 // pred_fallthru
      _
    // Predicated region
    $region18: #{tpu_custom_call.1} parent=1 // pred_check
      _
    $region19: #{tpu_custom_call.1} parent=1 // pred_check_branch
      %21 = sbr.rel (0) target = $region21
    $region20: #{tpu_custom_call.1} parent=1 // pred_region
      _
    $region21: #{tpu_custom_call.1} parent=1 // pred_fallthru
      _
    %v22 = vld [vmem:[%s1] sm:$0xff]
    %v23 = vld [vmem:[%s1 + $0x8] sm:$0xff]
    %v24 = vld [vmem:[%s1 + $0x10] sm:$0xff]
    %v25 = vld [vmem:[%s1 + $0x18] sm:$0x3f]
    %v26 = vld [vmem:[%s2] sm:$0xff]
    %v27 = vld [vmem:[%s2 + $0x8] sm:$0xff]
    %v28 = vld [vmem:[%s2 + $0x10] sm:$0xff]
    %v29 = vld [vmem:[%s2 + $0x18] sm:$0x3f]
    %v30 = vld [vmem:[%s3] sm:$0xff]
    %v31 = vld [vmem:[%s3 + $0x8] sm:$0xff]
    %v32 = vld [vmem:[%s3 + $0x10] sm:$0xff]
    %v33 = vld [vmem:[%s3 + $0x18] sm:$0x3f]
    %s34 = sld [smem:[#allocation2]]
    %v35 = vld [vmem:[%s0] sm:$0x7]
    %37 = vset.pattern.permute.xlu0 0
    %38 = vperm.xlu0 %37, %v22
    %v39 = vpop.permute.xlu0 %38
    %42 = vset.pattern.permute.xlu0 0
    %43 = vperm.xlu0 %42, %v23
    %v44 = vpop.permute.xlu0 %43
    %47 = vset.pattern.permute.xlu0 0
    %48 = vperm.xlu0 %47, %v24
    %v49 = vpop.permute.xlu0 %48
    %52 = vset.pattern.permute.xlu0 0
    %53 = vperm.xlu0 %52, %v25
    %v54 = vpop.permute.xlu0 %53
    %v56 = vlaneseq
    %v57 = vshrl.u32 %v56, 7
    %v58 = vsub.s32 0, %v57
    %v59 = vrot.slane %v35, %v58
    %v60 = vmul.f32 %v39, %v59
    %v61 = vmul.f32 %v44, %v59
    %v62 = vmul.f32 %v49, %v59
    %v63 = vmul.f32 %v54, %v59
    %64 = vset.pattern.permute.xlu0 1
    %65 = vperm.xlu0 %64, %v22
    %v66 = vpop.permute.xlu0 %65
    %68 = vset.pattern.permute.xlu0 1
    %69 = vperm.xlu0 %68, %v23
    %v70 = vpop.permute.xlu0 %69
    %72 = vset.pattern.permute.xlu0 1
    %73 = vperm.xlu0 %72, %v24
    %v74 = vpop.permute.xlu0 %73
    %76 = vset.pattern.permute.xlu0 1
    %77 = vperm.xlu0 %76, %v25
    %v78 = vpop.permute.xlu0 %77
    %v80 = vlaneseq
    %v81 = vshrl.u32 %v80, 7
    %v82 = vsub.s32 1, %v81
    %v83 = vrot.slane %v35, %v82
    %v84 = vmul.f32 %v66, %v83
    %v85 = vmul.f32 %v70, %v83
    %v86 = vmul.f32 %v74, %v83
    %v87 = vmul.f32 %v78, %v83
    %v88 = vadd.f32 %v60, %v84
    %v89 = vadd.f32 %v61, %v85
    %v90 = vadd.f32 %v62, %v86
    %v91 = vadd.f32 %v63, %v87
    %92 = vset.pattern.permute.xlu0 2
    %93 = vperm.xlu0 %92, %v22
    %v94 = vpop.permute.xlu0 %93
    %96 = vset.pattern.permute.xlu0 2
    %97 = vperm.xlu0 %96, %v23
    %v98 = vpop.permute.xlu0 %97
    %100 = vset.pattern.permute.xlu0 2
    %101 = vperm.xlu0 %100, %v24
    %v102 = vpop.permute.xlu0 %101
    %104 = vset.pattern.permute.xlu0 2
    %105 = vperm.xlu0 %104, %v25
    %v106 = vpop.permute.xlu0 %105
    %v108 = vlaneseq
    %v109 = vshrl.u32 %v108, 7
    %v110 = vsub.s32 2, %v109
    %v111 = vrot.slane %v35, %v110
    %v112 = vmul.f32 %v94, %v111
    %v113 = vmul.f32 %v98, %v111
    %v114 = vmul.f32 %v102, %v111
    %v115 = vmul.f32 %v106, %v111
    %v116 = vadd.f32 %v88, %v112
    %v117 = vadd.f32 %v89, %v113
    %v118 = vadd.f32 %v90, %v114
    %v119 = vadd.f32 %v91, %v115
    %121 = vset.pattern.permute.xlu0 0
    %122 = vperm.xlu0 %121, %v26
    %v123 = vpop.permute.xlu0 %122
    %126 = vset.pattern.permute.xlu0 0
    %127 = vperm.xlu0 %126, %v27
    %v128 = vpop.permute.xlu0 %127
    %131 = vset.pattern.permute.xlu0 0
    %132 = vperm.xlu0 %131, %v28
    %v133 = vpop.permute.xlu0 %132
    %136 = vset.pattern.permute.xlu0 0
    %137 = vperm.xlu0 %136, %v29
    %v138 = vpop.permute.xlu0 %137
    %v140 = vadd.f32 %v116, %v123
    %v141 = vadd.f32 %v117, %v128
    %v142 = vadd.f32 %v118, %v133
    %v143 = vadd.f32 %v119, %v138
    %v144 = vmax.f32 %v140, 0.0
    %v145 = vmax.f32 %v141, 0.0
    %v146 = vmax.f32 %v142, 0.0
    %v147 = vmax.f32 %v143, 0.0
    %149 = vset.pattern.permute.xlu0 0
    %150 = vperm.xlu0 %149, %v30
    %v151 = vpop.permute.xlu0 %150
    %154 = vset.pattern.permute.xlu0 0
    %155 = vperm.xlu0 %154, %v31
    %v156 = vpop.permute.xlu0 %155
    %159 = vset.pattern.permute.xlu0 0
    %160 = vperm.xlu0 %159, %v32
    %v161 = vpop.permute.xlu0 %160
    %164 = vset.pattern.permute.xlu0 0
    %165 = vperm.xlu0 %164, %v33
    %v166 = vpop.permute.xlu0 %165
    %v168 = vmul.f32 %v151, %v144
    %v169 = vmul.f32 %v156, %v145
    %v170 = vmul.f32 %v161, %v146
    %v171 = vmul.f32 %v166, %v147
    %v172 = vadd.f32 %v168, %v169
    %v173 = vadd.f32 %v172, %v170
    %vm174 = vcmask 1045504
    %v175 = vsel %vm174, %v171, 0.0
    %v176 = vadd.f32 %v173, %v175
    %v177 = vrot.slane %v176, 4
    %v178 = vadd.f32 %v176, %v177
    %v179 = vrot.slane %v178, 2
    %v180 = vadd.f32 %v178, %v179
    %v181 = vrot.slane %v180, 1
    %v182 = vadd.f32 %v180, %v181
    %v183 = vstv %s34
    %v184 = vadd.f32 %v182, %v183
    %185 = vst [vmem:[#allocation3] sm:$0x1] %v184
    // Predicated region
    $region22: #{tpu_custom_call.1} parent=1 // pred_check
      _
    $region23: #{tpu_custom_call.1} parent=1 // pred_check_branch
      %187 = sbr.rel (0) target = $region25
    $region24: #{tpu_custom_call.1} parent=1 // pred_region
      %s189 = ssub.s32 16, 16
      %190 = vsyncadd [#allocation4], %s189
      %s192 = sshll.u32 [#allocation3], 4
      %s193 = int_to_ptr.vmem [resolvable:$true] %s192
      %195 = dma.vmem_to_hbm [thread:$0]  %s193, 16, %s5, [#allocation4]
    $region25: #{tpu_custom_call.1} parent=1 // pred_fallthru
      _
    // Predicated region
    $region26: #{tpu_custom_call.1} parent=1 // pred_check
      _
    $region27: #{tpu_custom_call.1} parent=1 // pred_check_branch
      %197 = sbr.rel (0) target = $region29
    $region28: #{tpu_custom_call.1} parent=1 // pred_region
      %198 = dma.done [#allocation4], 16
    $region29: #{tpu_custom_call.1} parent=1 // pred_fallthru
      _
    %199 = vsyncpa [#allocation4], 1

</llo_original>
